<compile_context>
chip_gen: v7x
topology: tpu7x:2x2x1
jax: 0.10.0
libtpu: 0.0.40
codegen_flags: <defaults>
</compile_context>

<pallas_src>
import functools

import jax
import jax.numpy as jnp
from jax.experimental import pallas as pl
from jax.experimental.pallas import tpu as pltpu


def _ce2d_kernel(*refs, ignore_label, is_softmax, hw, tile_p,
                 tiles_per_chunk, n_full_tiles, total_tiles, has_weight):
    if has_weight:
        (logits_ref, target_ref, weight_ref,
         sum_ref, cnt_ref, acc_sum, acc_cnt) = refs
    else:
        logits_ref, target_ref, sum_ref, cnt_ref, acc_sum, acc_cnt = refs
        weight_ref = None

    ch = pl.program_id(1)
    t = pl.program_id(2)

    @pl.when(t == 0)
    def _():
        acc_sum[...] = jnp.zeros_like(acc_sum)
        acc_cnt[...] = jnp.zeros_like(acc_cnt)

    def body(apply_oob_mask):
        x = logits_ref[...]                                   # (C, TP) native dtype
        tgt = target_ref[...].astype(jnp.int32)               # (1, TP)

        valid = jnp.logical_and(tgt >= 0, tgt != ignore_label)   # (1, TP) bool
        if apply_oob_mask:
            lane = jax.lax.broadcasted_iota(jnp.int32, tgt.shape, 1)
            g_tile = ch * tiles_per_chunk + t
            in_bounds = (g_tile * tile_p + lane) < hw
            valid = jnp.logical_and(valid, in_bounds)
            # sanitize garbage boundary lanes BEFORE exp/log (NaN * 0 = NaN)
            x = jnp.where(in_bounds, x, jnp.zeros_like(x))
        vmask = valid.astype(jnp.float32)                     # (1, TP)

        # one-hot(target) over the class (sublane) axis via iota compare
        cls = jax.lax.broadcasted_iota(jnp.int32, x.shape, 0)  # (C, TP)
        onehot = cls == tgt                                    # bool (C, TP)

        # logit / prob of the target class (exact: single non-zero per column)
        tx = jnp.sum(jnp.where(onehot, x, jnp.zeros_like(x)),
                     axis=0, keepdims=True).astype(jnp.float32)   # (1, TP)

        if is_softmax:
            # cross entropy from logits: lse(x) - x[target]
            m = jnp.max(x, axis=0, keepdims=True)             # native dtype
            e = jnp.exp((x - m).astype(jnp.float32))          # f32 (C, TP)
            lse = m.astype(jnp.float32) + jnp.log(
                jnp.sum(e, axis=0, keepdims=True))
            pix = lse - tx                                    # (1, TP)
        else:
            # NLL on log(predict): -log(predict[target]); guard invalid lanes
            tx = jnp.where(valid, tx, 1.0)
            pix = -jnp.log(tx)

        if has_weight:
            wpix = jnp.sum(jnp.where(onehot, weight_ref[...], 0.0),
                           axis=0, keepdims=True)             # (1, TP) f32
            acc_sum[...] += pix * (wpix * vmask)
            acc_cnt[...] += wpix * vmask
        else:
            acc_sum[...] += pix * vmask
            acc_cnt[...] += vmask

    if total_tiles == n_full_tiles:
        body(False)                      # every tile is full and in-bounds
    elif n_full_tiles == 0:
        body(True)                       # every tile needs the bounds mask
    else:
        g = ch * tiles_per_chunk + t

        @pl.when(g < n_full_tiles)
        def _():
            body(False)

        @pl.when(g >= n_full_tiles)
        def _():
            body(True)

    @pl.when(t == pl.num_programs(2) - 1)
    def _():
        sum_ref[...] = jnp.sum(acc_sum[...]).reshape(1, 1, 1, 1)
        cnt_ref[...] = jnp.sum(acc_cnt[...]).reshape(1, 1, 1, 1)


def cross_entropy_2d(predict, target, weight=None, *, ignore_label=255,
                     is_softmax=True, size_average=True,
                     tile_p=None, n_chunks=None):
    """predict: (n, c, h, w); target: (n, h, w) int. Returns the scalar mean loss."""
    # NOTE: size_average is unused in the reference forward (reduction='mean'
    # is hard-coded there); kept only for signature parity.
    del size_average
    n, c, h, w = predict.shape
    hw = h * w

    # NCHW flattened is already (N, C, H*W): free reshape, native dtype on the wire.
    logits = predict.reshape(n, c, hw)
    if not jnp.issubdtype(target.dtype, jnp.integer):
        target = target.astype(jnp.int32)        # only cast if it isn't already int
    tgt = target.reshape(n, 1, hw)

    has_weight = weight is not None
    if has_weight:
        weight = jnp.asarray(weight, jnp.float32).reshape(c, 1)

    # ---- VMEM-budget-driven, lane-dense pixel tile --------------------------
    if tile_p is None:
        budget = 20 * 1024 * 1024                 # conservative across v5e/v6e/v7x
        itemsize = jnp.dtype(predict.dtype).itemsize
        # 2x double-buffered input DMA + ~3 live f32 (C, TP) intermediates
        bytes_per_pixel = c * (2 * itemsize + 12) + 16
        tile_p = budget // bytes_per_pixel
    tile_p = min(int(tile_p), 32768, pl.cdiv(hw, 128) * 128)
    tile_p = max(128, (tile_p // 128) * 128)
    n_tiles = pl.cdiv(hw, tile_p)
    n_full_tiles = hw // tile_p

    # ---- parallel pixel-chunk axis (keeps v7x's 2nd TC busy at small batch) --
    if n_chunks is None:
        n_chunks = 2 if n_tiles >= 2 else 1
    n_chunks = max(1, min(int(n_chunks), n_tiles))
    tiles_per_chunk = pl.cdiv(n_tiles, n_chunks)
    total_tiles = n_chunks * tiles_per_chunk      # may exceed n_tiles (padded tiles)

    if total_tiles == n_tiles:
        def pix_map(b, ch_, t_):
            return (b, 0, ch_ * tiles_per_chunk + t_)
    else:
        def pix_map(b, ch_, t_):
            # clamp fully out-of-range padded tiles onto the last real block;
            # their contribution is zeroed by the in-kernel bounds mask.
            return (b, 0, jnp.minimum(ch_ * tiles_per_chunk + t_, n_tiles - 1))

    in_specs = [
        pl.BlockSpec((None, c, tile_p), pix_map),      # classes on sublanes
        pl.BlockSpec((None, 1, tile_p), pix_map),      # lane-dense target row
    ]
    args = [logits, tgt]
    if has_weight:
        in_specs.append(pl.BlockSpec((c, 1), lambda b, ch_, t_: (0, 0)))
        args.append(weight)

    kernel = functools.partial(
        _ce2d_kernel, ignore_label=ignore_label, is_softmax=is_softmax,
        hw=hw, tile_p=tile_p, tiles_per_chunk=tiles_per_chunk,
        n_full_tiles=n_full_tiles, total_tiles=total_tiles,
        has_weight=has_weight)

    sum_b, cnt_b = pl.pallas_call(
        kernel,
        out_shape=(jax.ShapeDtypeStruct((n, n_chunks, 1, 1), jnp.float32),
                   jax.ShapeDtypeStruct((n, n_chunks, 1, 1), jnp.float32)),
        grid_spec=pltpu.PrefetchScalarGridSpec(
            num_scalar_prefetch=0,
            grid=(n, n_chunks, tiles_per_chunk),
            in_specs=in_specs,
            out_specs=(
                pl.BlockSpec((1, 1, 1, 1), lambda b, ch_, t_: (b, ch_, 0, 0)),
                pl.BlockSpec((1, 1, 1, 1), lambda b, ch_, t_: (b, ch_, 0, 0))),
            scratch_shapes=[pltpu.VMEM((1, tile_p), jnp.float32),
                            pltpu.VMEM((1, tile_p), jnp.float32)]),
        compiler_params=pltpu.CompilerParams(
            dimension_semantics=("parallel", "parallel", "arbitrary"),
            vmem_limit_bytes=48 * 1024 * 1024),
    )(*args)

    total = jnp.sum(sum_b)
    denom = jnp.sum(cnt_b)
    # PyTorch returns zeros(1) when no valid pixel exists; we return scalar 0.
    # TODO(synk): targets >= C (but != ignore_label) silently contribute zero
    # here, whereas PyTorch would raise; no clean in-kernel equivalent.
    return jnp.where(denom > 0, total / denom, jnp.float32(0.0))


if __name__ == "__main__":
    key = jax.random.PRNGKey(0)
    k1, k2, k3, k4 = jax.random.split(key, 4)

    def ref_loss(predict, target, weight=None, ignore_label=255, is_softmax=True):
        c_ = predict.shape[1]
        logits = jnp.transpose(predict, (0, 2, 3, 1)).reshape(-1, c_).astype(jnp.float32)
        t = target.reshape(-1)
        valid = (t >= 0) & (t != ignore_label)
        tc = jnp.clip(t, 0, c_ - 1)
        logp = jax.nn.log_softmax(logits, axis=-1) if is_softmax else jnp.log(logits)
        nll = -jnp.take_along_axis(logp, tc[:, None], axis=-1)[:, 0]
        wt = valid.astype(jnp.float32)
        if weight is not None:
            wt = wt * jnp.asarray(weight, jnp.float32)[tc]
        return jnp.sum(wt * nll) / jnp.sum(wt)

    # --- case 1: basic softmax CE with ignore_label pixels -------------------
    n, c, h, w = 2, 4, 16, 16
    predict = jax.random.normal(k1, (n, c, h, w), jnp.float32)
    target = jax.random.randint(k2, (n, h, w), 0, c).astype(jnp.int32)
    target = target.at[0, 0, :4].set(255)

    loss = cross_entropy_2d(predict, target)
    jax.block_until_ready(loss)
    ref = ref_loss(predict, target)
    assert jnp.allclose(loss, ref, atol=1e-5, rtol=1e-5), (loss, ref)

    # --- case 2: class-weighted ----------------------------------------------
    cls_w = jnp.array([0.5, 1.0, 2.0, 1.5], jnp.float32)
    loss_w = cross_entropy_2d(predict, target, weight=cls_w)
    jax.block_until_ready(loss_w)
    ref_w = ref_loss(predict, target, weight=cls_w)
    assert jnp.allclose(loss_w, ref_w, atol=1e-5, rtol=1e-5), (loss_w, ref_w)

    # --- case 3: is_softmax=False (NLL on probabilities) ---------------------
    probs = jax.nn.softmax(predict, axis=1)
    loss_n = cross_entropy_2d(probs, target, is_softmax=False)
    jax.block_until_ready(loss_n)
    ref_n = ref_loss(probs, target, is_softmax=False)
    assert jnp.allclose(loss_n, ref_n, atol=1e-5, rtol=1e-5), (loss_n, ref_n)

    # --- case 4: ragged spatial size exercising the remainder tile, the padded
    #             (fully out-of-bounds) tile, and the parallel pixel-chunk axis
    n2, c2, h2, w2 = 1, 5, 18, 20
    predict2 = jax.random.normal(k3, (n2, c2, h2, w2), jnp.float32)
    target2 = jax.random.randint(k4, (n2, h2, w2), 0, c2).astype(jnp.int32)
    target2 = target2.at[0, :2, :].set(255)
    loss2 = cross_entropy_2d(predict2, target2, tile_p=128, n_chunks=2)
    jax.block_until_ready(loss2)
    ref2 = ref_loss(predict2, target2)
    assert jnp.allclose(loss2, ref2, atol=1e-5, rtol=1e-5), (loss2, ref2)

    print("KERNEL_OK")
</pallas_src>

<mosaic_0001>
module attributes {stable_mosaic.version = 11 : i64} {
  func.func @_ce2d_kernel(%arg0: i32, %arg1: i32, %arg2: i32, %arg3: memref<1x4x256xf32, #tpu.memory_space<vmem>>, %arg4: memref<1x1x256xi32, #tpu.memory_space<vmem>>, %arg5: memref<1x1x1x1xf32, #tpu.memory_space<vmem>>, %arg6: memref<1x1x1x1xf32, #tpu.memory_space<vmem>>, %arg7: memref<1x256xf32, #tpu.memory_space<vmem>>, %arg8: memref<1x256xf32, #tpu.memory_space<vmem>>) attributes {dimension_semantics = [#tpu.dimension_semantics<parallel>, #tpu.dimension_semantics<parallel>, #tpu.dimension_semantics<arbitrary>], iteration_bounds = array<i64: 2, 1, 1>, scalar_prefetch = 0 : i64, scratch_operands = 2 : i64, tpu.core_type = #tpu.core_type<tc>, window_params = [{transform_indices = @transform_0, window_bounds = array<i64: 1, 4, 256>}, {transform_indices = @transform_1, window_bounds = array<i64: 1, 1, 256>}, {transform_indices = @transform_2, window_bounds = array<i64: 1, 1, 1, 1>}, {transform_indices = @transform_3, window_bounds = array<i64: 1, 1, 1, 1>}]} {
    %c0_i32 = arith.constant 0 : i32
    %0 = arith.cmpi eq, %arg2, %c0_i32 : i32
    %1 = arith.extui %0 : i1 to i32
    %c0_i32_0 = arith.constant 0 : i32
    %2 = arith.cmpi ne, %1, %c0_i32_0 : i32
    scf.if %2 {
      %cst_20 = arith.constant 0.000000e+00 : f32
      %41 = vector.broadcast %cst_20 : f32 to vector<1x256xf32>
      %c0_21 = arith.constant 0 : index
      %c0_22 = arith.constant 0 : index
      %42 = vector.load %arg7[%c0_21, %c0_22] : memref<1x256xf32, #tpu.memory_space<vmem>>, vector<1x256xf32>
      tpu.vector_store %arg7[%c0_21, %c0_22], %41 {strides = array<i32>} : memref<1x256xf32, #tpu.memory_space<vmem>>, vector<1x256xf32>,
      %cst_23 = arith.constant 0.000000e+00 : f32
      %43 = vector.broadcast %cst_23 : f32 to vector<1x256xf32>
      %c0_24 = arith.constant 0 : index
      %c0_25 = arith.constant 0 : index
      %44 = vector.load %arg8[%c0_24, %c0_25] : memref<1x256xf32, #tpu.memory_space<vmem>>, vector<1x256xf32>
      tpu.vector_store %arg8[%c0_24, %c0_25], %43 {strides = array<i32>} : memref<1x256xf32, #tpu.memory_space<vmem>>, vector<1x256xf32>,
    } else {
    }
    %c0 = arith.constant 0 : index
    %c0_1 = arith.constant 0 : index
    %c0_2 = arith.constant 0 : index
    %3 = vector.load %arg3[%c0, %c0_1, %c0_2] : memref<1x4x256xf32, #tpu.memory_space<vmem>>, vector<1x4x256xf32>
    %4 = vector.shape_cast %3 : vector<1x4x256xf32> to vector<4x256xf32>
    %c0_3 = arith.constant 0 : index
    %c0_4 = arith.constant 0 : index
    %c0_5 = arith.constant 0 : index
    %5 = vector.load %arg4[%c0_3, %c0_4, %c0_5] : memref<1x1x256xi32, #tpu.memory_space<vmem>>, vector<1x1x256xi32>
    %6 = vector.shape_cast %5 : vector<1x1x256xi32> to vector<1x256xi32>
    %c0_i32_6 = arith.constant 0 : i32
    %7 = vector.broadcast %c0_i32_6 : i32 to vector<1x256xi32>
    %8 = arith.cmpi sge, %6, %7 : vector<1x256xi32>
    %c255_i32 = arith.constant 255 : i32
    %9 = vector.broadcast %c255_i32 : i32 to vector<1x256xi32>
    %10 = arith.cmpi ne, %6, %9 : vector<1x256xi32>
    %11 = arith.andi %8, %10 : vector<1x256xi1>
    %12 = arith.extui %11 : vector<1x256xi1> to vector<1x256xi32>
    %13 = arith.sitofp %12 : vector<1x256xi32> to vector<1x256xf32>
    %14 = tpu.iota {dimensions = array<i32: 0>} : vector<4x256xi32>
    %15 = vector.broadcast %6 : vector<1x256xi32> to vector<4x256xi32>
    %16 = arith.cmpi eq, %14, %15 : vector<4x256xi32>
    %cst = arith.constant 0.000000e+00 : f32
    %17 = vector.broadcast %cst : f32 to vector<4x256xf32>
    %18 = arith.select %16, %4, %17 : vector<4x256xi1>, vector<4x256xf32>
    %cst_7 = arith.constant dense<0.000000e+00> : vector<256xf32>
    %19 = vector.multi_reduction <add>, %18, %cst_7 [0] : vector<4x256xf32> to vector<256xf32>
    %20 = vector.shape_cast %19 : vector<256xf32> to vector<1x256xf32>
    %cst_8 = arith.constant dense<0xFF800000> : vector<256xf32>
    %21 = vector.multi_reduction <maximumf>, %4, %cst_8 [0] : vector<4x256xf32> to vector<256xf32>
    %22 = vector.shape_cast %21 : vector<256xf32> to vector<1x256xf32>
    %23 = vector.broadcast %22 : vector<1x256xf32> to vector<4x256xf32>
    %24 = arith.subf %4, %23 : vector<4x256xf32>
    %25 = math.exp %24 : vector<4x256xf32>
    %cst_9 = arith.constant dense<0.000000e+00> : vector<256xf32>
    %26 = vector.multi_reduction <add>, %25, %cst_9 [0] : vector<4x256xf32> to vector<256xf32>
    %27 = vector.shape_cast %26 : vector<256xf32> to vector<1x256xf32>
    %28 = math.log %27 : vector<1x256xf32>
    %29 = arith.addf %22, %28 : vector<1x256xf32>
    %30 = arith.subf %29, %20 : vector<1x256xf32>
    %c0_10 = arith.constant 0 : index
    %c0_11 = arith.constant 0 : index
    %31 = vector.load %arg7[%c0_10, %c0_11] : memref<1x256xf32, #tpu.memory_space<vmem>>, vector<1x256xf32>
    %32 = arith.mulf %30, %13 : vector<1x256xf32>
    %33 = arith.addf %31, %32 : vector<1x256xf32>
    %c0_12 = arith.constant 0 : index
    %c0_13 = arith.constant 0 : index
    %34 = vector.load %arg7[%c0_12, %c0_13] : memref<1x256xf32, #tpu.memory_space<vmem>>, vector<1x256xf32>
    tpu.vector_store %arg7[%c0_12, %c0_13], %33 {strides = array<i32>} : memref<1x256xf32, #tpu.memory_space<vmem>>, vector<1x256xf32>,
    %c0_14 = arith.constant 0 : index
    %c0_15 = arith.constant 0 : index
    %35 = vector.load %arg8[%c0_14, %c0_15] : memref<1x256xf32, #tpu.memory_space<vmem>>, vector<1x256xf32>
    %36 = arith.addf %35, %13 : vector<1x256xf32>
    %c0_16 = arith.constant 0 : index
    %c0_17 = arith.constant 0 : index
    %37 = vector.load %arg8[%c0_16, %c0_17] : memref<1x256xf32, #tpu.memory_space<vmem>>, vector<1x256xf32>
    tpu.vector_store %arg8[%c0_16, %c0_17], %36 {strides = array<i32>} : memref<1x256xf32, #tpu.memory_space<vmem>>, vector<1x256xf32>,
    %c0_i32_18 = arith.constant 0 : i32
    %38 = arith.cmpi eq, %arg2, %c0_i32_18 : i32
    %39 = arith.extui %38 : i1 to i32
    %c0_i32_19 = arith.constant 0 : i32
    %40 = arith.cmpi ne, %39, %c0_i32_19 : i32
    scf.if %40 {
      %c0_20 = arith.constant 0 : index
      %c0_21 = arith.constant 0 : index
      %41 = vector.load %arg7[%c0_20, %c0_21] : memref<1x256xf32, #tpu.memory_space<vmem>>, vector<1x256xf32>
      %42 = vector.shape_cast %41 : vector<1x256xf32> to vector<1x1x256xf32>
      %cst_22 = arith.constant dense<0.000000e+00> : vector<1xf32>
      %43 = vector.multi_reduction <add>, %42, %cst_22 [1, 2] : vector<1x1x256xf32> to vector<1xf32>
      %44 = vector.shape_cast %43 : vector<1xf32> to vector<1x1x1xf32>
      %45 = vector.extract %44[0, 0, 0] : f32 from vector<1x1x1xf32>
      %46 = vector.broadcast %45 : f32 to vector<1x1x1x1xf32>
      %c0_23 = arith.constant 0 : index
      %c0_24 = arith.constant 0 : index
      %c0_25 = arith.constant 0 : index
      %c0_26 = arith.constant 0 : index
      %47 = vector.load %arg5[%c0_23, %c0_24, %c0_25, %c0_26] : memref<1x1x1x1xf32, #tpu.memory_space<vmem>>, vector<1x1x1x1xf32>
      tpu.vector_store %arg5[%c0_23, %c0_24, %c0_25, %c0_26], %46 {strides = array<i32>} : memref<1x1x1x1xf32, #tpu.memory_space<vmem>>, vector<1x1x1x1xf32>,
      %c0_27 = arith.constant 0 : index
      %c0_28 = arith.constant 0 : index
      %48 = vector.load %arg8[%c0_27, %c0_28] : memref<1x256xf32, #tpu.memory_space<vmem>>, vector<1x256xf32>
      %49 = vector.shape_cast %48 : vector<1x256xf32> to vector<1x1x256xf32>
      %cst_29 = arith.constant dense<0.000000e+00> : vector<1xf32>
      %50 = vector.multi_reduction <add>, %49, %cst_29 [1, 2] : vector<1x1x256xf32> to vector<1xf32>
      %51 = vector.shape_cast %50 : vector<1xf32> to vector<1x1x1xf32>
      %52 = vector.extract %51[0, 0, 0] : f32 from vector<1x1x1xf32>
      %53 = vector.broadcast %52 : f32 to vector<1x1x1x1xf32>
      %c0_30 = arith.constant 0 : index
      %c0_31 = arith.constant 0 : index
      %c0_32 = arith.constant 0 : index
      %c0_33 = arith.constant 0 : index
      %54 = vector.load %arg6[%c0_30, %c0_31, %c0_32, %c0_33] : memref<1x1x1x1xf32, #tpu.memory_space<vmem>>, vector<1x1x1x1xf32>
      tpu.vector_store %arg6[%c0_30, %c0_31, %c0_32, %c0_33], %53 {strides = array<i32>} : memref<1x1x1x1xf32, #tpu.memory_space<vmem>>, vector<1x1x1x1xf32>,
    } else {
    }
    return
  }
  func.func @transform_0(%arg0: i32, %arg1: i32, %arg2: i32) -> (i32, i32, i32) {
    %c1_i32 = arith.constant 1 : i32
    %0 = arith.muli %arg1, %c1_i32 : i32
    %1 = arith.addi %0, %arg2 : i32
    %c0_i32 = arith.constant 0 : i32
    %c0_i32_0 = arith.constant 0 : i32
    return %arg0, %c0_i32, %1 : i32, i32, i32
  }
  func.func @transform_1(%arg0: i32, %arg1: i32, %arg2: i32) -> (i32, i32, i32) {
    %c1_i32 = arith.constant 1 : i32
    %0 = arith.muli %arg1, %c1_i32 : i32
    %1 = arith.addi %0, %arg2 : i32
    %c0_i32 = arith.constant 0 : i32
    %c0_i32_0 = arith.constant 0 : i32
    return %arg0, %c0_i32, %1 : i32, i32, i32
  }
  func.func @transform_2(%arg0: i32, %arg1: i32, %arg2: i32) -> (i32, i32, i32, i32) {
    %c0_i32 = arith.constant 0 : i32
    %c0_i32_0 = arith.constant 0 : i32
    %c0_i32_1 = arith.constant 0 : i32
    return %arg0, %arg1, %c0_i32, %c0_i32_0 : i32, i32, i32, i32
  }
  func.func @transform_3(%arg0: i32, %arg1: i32, %arg2: i32) -> (i32, i32, i32, i32) {
    %c0_i32 = arith.constant 0 : i32
    %c0_i32_0 = arith.constant 0 : i32
    %c0_i32_1 = arith.constant 0 : i32
    return %arg0, %arg1, %c0_i32, %c0_i32_0 : i32, i32, i32, i32
  }
}

</mosaic_0001>

<llo_original>
// kernel: tpu_custom_call.1
$region0: #{tpu_custom_call.1}
  #allocation0 [shape = 'u32[]', space=smem, size = 0x4, offset = 0x4, fixed_abs, tag = 'smem constant byte address 0x4 - core index']
  #allocation1 [shape = 'u32[144,128]{1,0:T(1,128)}', space=vmem, size = 0x12000, scoped, tag = 'internal scratch']
  #allocation2 [shape = 'f32[1,256]{1,0:T(1,128)}', space=vmem, size = 0x400, scoped, tag = 'scratch operand']
  #allocation3 [shape = 'f32[1,256]{1,0:T(1,128)}', space=vmem, size = 0x400, scoped, tag = 'scratch operand']
  %s0 = inlined_call_operand.hbm [shape: f32[2,4,256], index: 0, kind: input, shape index: {}]
  %s1 = inlined_call_operand.hbm [shape: s32[2,1,256], index: 1, kind: input, shape index: {}]
  %s2 = inlined_call_operand.vmem [shape: f32[2,1,1,1], index: 2, kind: output, shape index: {0}]
  %s3 = inlined_call_operand.vmem [shape: f32[2,1,1,1], index: 3, kind: output, shape index: {1}]
  %4 = xla_tuple %s2, %s3
  %s5 = sld [smem:[#allocation0]]
  $region65: #{tpu_custom_call.1} parent=0
    _
  %s7 = ssub.s32 1, %s5
  %s8 = scalar_select 0, %s7, %s5
  $region1: #{tpu_custom_call.1} parent=0
    #allocation4 [shape = 'u8[8192]{0}', space=vmem, size = 0x2000, scoped, tag = 'input window, operand 0']
    #allocation5 [shape = 's32[2]{0}', space=sflag, size = 0x8, scoped, tag = 'scoped memory for tpu_custom_call.1']
    #allocation6 [shape = 'u8[2048]{0}', space=vmem, size = 0x800, scoped, tag = 'input window, operand 1']
    #allocation7 [shape = 's32[2]{0}', space=sflag, size = 0x8, scoped, tag = 'scoped memory for tpu_custom_call.1']
    %9 = vsyncpa [#allocation5], 0
    %s10 = scalar_lea.sflag [#allocation5], 1
    %11 = vsyncpa %s10, 0
    %12 = vsyncpa [#allocation7], 0
    %s13 = scalar_lea.sflag [#allocation7], 1
    %14 = vsyncpa %s13, 0
    loop: start=0, step=1, limit=4
    $region2: #{tpu_custom_call.1} parent=1 // loop_pre_header
      _
    $region3: #{tpu_custom_call.1} parent=1 // loop_header
      %s16 = sphi 0, %s20
      %p17 = scmp.ge.s32.totalorder %s16, 4
      %s23 = sphi 0, %s42
      %s24 = sphi 0, %s38
      %s25 = sphi 0, %s34
      %s26 = sphi 0, %s23
      %s27 = sphi 0, %s24
      %s28 = sphi 0, %s25
      %s29 = sphi 0, %s26
      %s30 = sphi 0, %s27
      %s31 = sphi 0, %s28
      %s49 = sphi 0, %s51
      %s52 = sphi 0, %s49
      %s53 = sphi 0, %s52
      %s69 = sphi 0, %s53
      %s79 = sphi 0, %s81
      %s82 = sphi 0, %s79
      %s83 = sphi 0, %s82
      %s99 = sphi 0, %s83
      %s107 = sphi 0, %s109
      %s110 = sphi 0, %s107
      %s111 = sphi 0, %s110
      %s127 = sphi 0, %s111
      %s135 = sphi 0, %s137
      %s138 = sphi 0, %s135
      %s139 = sphi 0, %s138
      %s155 = sphi 0, %s139
    $region4: #{tpu_custom_call.1} parent=1 // loop_header_branch
      %19 = sbr.rel (%p17) target = $region8
    $region5: #{tpu_custom_call.1} parent=1 // loop_body
      %s21 = ssub.s32 %s16, 1
      %s22 = ssub.s32 %s16, 2
      %s32 = sadd.s32 1, %s25
      %p33 = scmp.ge.s32.totalorder %s32, 1
      %s34 = scalar_select %p33, 0, %s32
      %s35 = sadd.s32 1, %s24
      %s36 = scalar_select %p33, %s35, %s24
      %p37 = scmp.ge.s32.totalorder %s36, 1
      %s38 = scalar_select %p37, 0, %s36
      %s39 = sadd.s32 1, %s23
      %s40 = scalar_select %p37, %s39, %s23
      %p41 = scmp.ge.s32.totalorder %s40, 2
      %s42 = scalar_select %p41, 0, %s40
      %s43 = sadd.s32 %s24, %s25
      %s44 = sadd.s32 %s38, %s34
      %s45 = ssub.s32 %s23, %s42
      %s46 = ssub.s32 %s43, %s44
      %s47 = sor.u32 %s45, %s46
      %p48 = scmp.eq.s32.totalorder %s47, 0
      %s50 = sadd.s32 %s49, 1
      %s51 = scalar_select %p48, %s49, %s50
      %p54 = pneg %p48
      %p55 = scmp.eq.s32.totalorder %s16, 1
      %p56 = por %p54, %p55
      %p57 = scmp.ne.s32.totalorder %s49, %s52
      %p58 = scmp.eq.s32.totalorder %s16, 0
      %p59 = por %p57, %p58
      %p60 = scmp.ne.s32.totalorder %s49, %s52
      %p61 = scmp.eq.s32.totalorder %s21, 1
      %p62 = por %p60, %p61
      %p63 = scmp.ne.s32.totalorder %s52, %s53
      %p64 = scmp.eq.s32.totalorder %s21, 0
      %p65 = por %p63, %p64
      %p66 = scmp.ne.s32.totalorder %s52, %s53
      %p67 = scmp.eq.s32.totalorder %s22, 1
      %p68 = por %p66, %p67
      %p70 = scmp.ne.s32.totalorder %s53, %s69
      %p71 = scmp.eq.s32.totalorder %s22, 0
      %p72 = por %p70, %p71
      %s73 = sadd.s32 %s24, %s25
      %s74 = sadd.s32 %s38, %s34
      %s75 = ssub.s32 %s23, %s42
      %s76 = ssub.s32 %s73, %s74
      %s77 = sor.u32 %s75, %s76
      %p78 = scmp.eq.s32.totalorder %s77, 0
      %s80 = sadd.s32 %s79, 1
      %s81 = scalar_select %p78, %s79, %s80
      %p84 = pneg %p78
      %p85 = scmp.eq.s32.totalorder %s16, 1
      %p86 = por %p84, %p85
      %p87 = scmp.ne.s32.totalorder %s79, %s82
      %p88 = scmp.eq.s32.totalorder %s16, 0
      %p89 = por %p87, %p88
      %p90 = scmp.ne.s32.totalorder %s79, %s82
      %p91 = scmp.eq.s32.totalorder %s21, 1
      %p92 = por %p90, %p91
      %p93 = scmp.ne.s32.totalorder %s82, %s83
      %p94 = scmp.eq.s32.totalorder %s21, 0
      %p95 = por %p93, %p94
      %p96 = scmp.ne.s32.totalorder %s82, %s83
      %p97 = scmp.eq.s32.totalorder %s22, 1
      %p98 = por %p96, %p97
      %p100 = scmp.ne.s32.totalorder %s83, %s99
      %p101 = scmp.eq.s32.totalorder %s22, 0
      %p102 = por %p100, %p101
      %s103 = ssub.s32 %s23, %s42
      %s104 = ssub.s32 %s24, %s38
      %s105 = sor.u32 %s103, %s104
      %p106 = scmp.eq.s32.totalorder %s105, 0
      %s108 = sadd.s32 %s107, 1
      %s109 = scalar_select %p106, %s107, %s108
      %p112 = pneg %p106
      %p113 = scmp.eq.s32.totalorder %s16, 1
      %p114 = por %p112, %p113
      %p115 = scmp.ne.s32.totalorder %s107, %s110
      %p116 = scmp.eq.s32.totalorder %s16, 0
      %p117 = por %p115, %p116
      %p118 = scmp.ne.s32.totalorder %s107, %s110
      %p119 = scmp.eq.s32.totalorder %s21, 1
      %p120 = por %p118, %p119
      %p121 = scmp.ne.s32.totalorder %s110, %s111
      %p122 = scmp.eq.s32.totalorder %s21, 0
      %p123 = por %p121, %p122
      %p124 = scmp.ne.s32.totalorder %s110, %s111
      %p125 = scmp.eq.s32.totalorder %s22, 1
      %p126 = por %p124, %p125
      %p128 = scmp.ne.s32.totalorder %s111, %s127
      %p129 = scmp.eq.s32.totalorder %s22, 0
      %p130 = por %p128, %p129
      %s131 = ssub.s32 %s23, %s42
      %s132 = ssub.s32 %s24, %s38
      %s133 = sor.u32 %s131, %s132
      %p134 = scmp.eq.s32.totalorder %s133, 0
      %s136 = sadd.s32 %s135, 1
      %s137 = scalar_select %p134, %s135, %s136
      %p140 = pneg %p134
      %p141 = scmp.eq.s32.totalorder %s16, 1
      %p142 = por %p140, %p141
      %p143 = scmp.ne.s32.totalorder %s135, %s138
      %p144 = scmp.eq.s32.totalorder %s16, 0
      %p145 = por %p143, %p144
      %p146 = scmp.ne.s32.totalorder %s135, %s138
      %p147 = scmp.eq.s32.totalorder %s21, 1
      %p148 = por %p146, %p147
      %p149 = scmp.ne.s32.totalorder %s138, %s139
      %p150 = scmp.eq.s32.totalorder %s21, 0
      %p151 = por %p149, %p150
      %p152 = scmp.ne.s32.totalorder %s138, %s139
      %p153 = scmp.eq.s32.totalorder %s22, 1
      %p154 = por %p152, %p153
      %p156 = scmp.ne.s32.totalorder %s139, %s155
      %p157 = scmp.eq.s32.totalorder %s22, 0
      %p158 = por %p156, %p157
      %p159 = scmp.le.s32.totalorder 1, %s16
      %p160 = scmp.lt.s32.totalorder %s16, 3
      %p161 = pnand %p159, %p160
      %p162 = pneg %p161
      // Predicated region
      $region9: #{tpu_custom_call.1} parent=5 // pred_check
        _
      $region10: #{tpu_custom_call.1} parent=5 // pred_check_branch
        %164 = sbr.rel (%p161) target = $region12
      $region11: #{tpu_custom_call.1} parent=5 // pred_region
        %s165 = ssub.s32 %s16, 1
      $region12: #{tpu_custom_call.1} parent=5 // pred_fallthru
        _
      %p166 = scmp.lt.s32.totalorder %s16, 2
      // Predicated region
      $region13: #{tpu_custom_call.1} parent=5 // pred_check
        %p167 = pneg %p166
      $region14: #{tpu_custom_call.1} parent=5 // pred_check_branch
        %169 = sbr.rel (%p167) target = $region16
      $region15: #{tpu_custom_call.1} parent=5 // pred_region
        // Predicated region
        $region17: #{tpu_custom_call.1} parent=15 // pred_check
          %p170 = pneg %p59
        $region18: #{tpu_custom_call.1} parent=15 // pred_check_branch
          %172 = sbr.rel (%p170) target = $region20
        $region19: #{tpu_custom_call.1} parent=15 // pred_region
          %s173 = sand.u32 %s49, 1
          %s174 = scalar_lea.sflag [#allocation5], %s173
          %s175 = sand.u32 %s49, 1
          %s176 = smul.addr %s175, 8
          %s177 = scalar_lea.vmem [#allocation4], %s176
          %s178 = sadd.s32 %s24, %s25
          %s179 = smul.u32 2, %s178
          %s181 = ssub.s32 128, 128
          %182 = vsyncadd %s174, %s181
          %s183 = smul.addr %s23, 2
          %s184 = sadd.s32 %s179, %s183
          %s185 = smul.addr %s184, 64
          %s186 = scalar_lea.hbm %s0, %s185
          %s188 = sshll.u32 %s177, 4
          %s189 = int_to_ptr.vmem [resolvable:$true] %s188
          %191 = dma.hbm_to_vmem [thread:$0]  %s186, 128, %s189, %s174
        $region20: #{tpu_custom_call.1} parent=15 // pred_fallthru
          _
        // Predicated region
        $region21: #{tpu_custom_call.1} parent=15 // pred_check
          %p192 = pneg %p89
        $region22: #{tpu_custom_call.1} parent=15 // pred_check_branch
          %194 = sbr.rel (%p192) target = $region24
        $region23: #{tpu_custom_call.1} parent=15 // pred_region
          %s195 = sand.u32 %s79, 1
          %s196 = scalar_lea.sflag [#allocation7], %s195
          %s197 = sand.u32 %s79, 1
          %s198 = smul.addr %s197, 2
          %s199 = scalar_lea.vmem [#allocation6], %s198
          %s200 = sadd.s32 %s24, %s25
          %s201 = smul.u32 2, %s200
          %s203 = ssub.s32 32, 32
          %204 = vsyncadd %s196, %s203
          %s205 = smul.addr %s23, 2
          %s206 = sadd.s32 %s201, %s205
          %s207 = smul.addr %s206, 16
          %s208 = scalar_lea.hbm %s1, %s207
          %s210 = sshll.u32 %s199, 4
          %s211 = int_to_ptr.vmem [resolvable:$true] %s210
          %213 = dma.hbm_to_vmem [thread:$0]  %s208, 32, %s211, %s196
        $region24: #{tpu_custom_call.1} parent=15 // pred_fallthru
          _
      $region16: #{tpu_custom_call.1} parent=5 // pred_fallthru
        _
      %p214 = scmp.le.s32.totalorder 1, %s16
      %p215 = scmp.lt.s32.totalorder %s16, 3
      %p216 = pnand %p214, %p215
      %p217 = pneg %p216
      // Predicated region
      $region25: #{tpu_custom_call.1} parent=5 // pred_check
        _
      $region26: #{tpu_custom_call.1} parent=5 // pred_check_branch
        %219 = sbr.rel (%p216) target = $region28
      $region27: #{tpu_custom_call.1} parent=5 // pred_region
        %s220 = ssub.s32 %s16, 1
        %s221 = sand.u32 %s52, 1
        %s222 = scalar_lea.sflag [#allocation5], %s221
        %s223 = sand.u32 %s52, 1
        %s224 = smul.addr %s223, 8
        %s225 = scalar_lea.vmem [#allocation4], %s224
        // Predicated region
        $region29: #{tpu_custom_call.1} parent=27 // pred_check
          %p226 = pneg %p65
        $region30: #{tpu_custom_call.1} parent=27 // pred_check_branch
          %228 = sbr.rel (%p226) target = $region32
        $region31: #{tpu_custom_call.1} parent=27 // pred_region
          %229 = dma.done %s222, 128
        $region32: #{tpu_custom_call.1} parent=27 // pred_fallthru
          _
        %s230 = sand.u32 %s82, 1
        %s231 = scalar_lea.sflag [#allocation7], %s230
        %s232 = sand.u32 %s82, 1
        %s233 = smul.addr %s232, 2
        %s234 = scalar_lea.vmem [#allocation6], %s233
        // Predicated region
        $region33: #{tpu_custom_call.1} parent=27 // pred_check
          %p235 = pneg %p95
        $region34: #{tpu_custom_call.1} parent=27 // pred_check_branch
          %237 = sbr.rel (%p235) target = $region36
        $region35: #{tpu_custom_call.1} parent=27 // pred_region
          %238 = dma.done %s231, 32
        $region36: #{tpu_custom_call.1} parent=27 // pred_fallthru
          _
        %s239 = sand.u32 %s52, 1
        %s240 = scalar_lea.sflag [#allocation5], %s239
        %s241 = sand.u32 %s52, 1
        %s242 = smul.addr %s241, 8
        %s243 = scalar_lea.vmem [#allocation4], %s242
        %p244 = pneg %p65
        %p245 = pneg %p62
        %s246 = sand.u32 %s82, 1
        %s247 = scalar_lea.sflag [#allocation7], %s246
        %s248 = sand.u32 %s82, 1
        %s249 = smul.addr %s248, 2
        %s250 = scalar_lea.vmem [#allocation6], %s249
        %p251 = pneg %p95
        %p252 = pneg %p92
        %p253 = pneg %p123
        %p254 = pneg %p120
        %p255 = scmp.lt.s32.totalorder %s26, 1
        %s256 = scalar_select %p255, %s26, 1
        %p257 = scmp.lt.s32.totalorder %s27, 0
        %s258 = scalar_select %p257, %s27, 0
        %s259 = sadd.s32 %s258, %s256
        %s260 = scalar_lea.vmem %s2, %s259
        %p261 = pneg %p151
        %p262 = pneg %p148
        %p263 = scmp.lt.s32.totalorder %s26, 1
        %s264 = scalar_select %p263, %s26, 1
        %p265 = scmp.lt.s32.totalorder %s27, 0
        %s266 = scalar_select %p265, %s27, 0
        %s267 = sadd.s32 %s266, %s264
        %s268 = scalar_lea.vmem %s3, %s267
        %s269 = sadd.s32 %s27, %s28
        %s270 = smul.u32 2, %s269
        %s271 = sadd.s32 %s27, %s28
        %s272 = smul.u32 2, %s271
        %p273 = scmp.lt.s32.totalorder %s26, 1
        %s274 = scalar_select %p273, %s26, 1
        %p275 = scmp.lt.s32.totalorder %s27, 0
        %s276 = scalar_select %p275, %s27, 0
        %s277 = sadd.s32 %s276, %s274
        %s278 = scalar_lea.vmem %s2, %s277
        %p279 = scmp.lt.s32.totalorder %s26, 1
        %s280 = scalar_select %p279, %s26, 1
        %p281 = scmp.lt.s32.totalorder %s27, 0
        %s282 = scalar_select %p281, %s27, 0
        %s283 = sadd.s32 %s282, %s280
        %s284 = scalar_lea.vmem %s3, %s283
        %p285 = scmp.eq.s32.totalorder %s28, 0
        // Predicated region
        $region37: #{tpu_custom_call.1} parent=27 // pred_check
          %p286 = pneg %p285
        $region38: #{tpu_custom_call.1} parent=27 // pred_check_branch
          %288 = sbr.rel (%p286) target = $region40
        $region39: #{tpu_custom_call.1} parent=27 // pred_region
          %v289 = vlaneseq
          %vm290 = vcmp.ge.s32.totalorder %v289, 0
          %vm291 = vcmp.lt.s32.totalorder %v289, 256
          %vm292 = vmand %vm290, %vm291
          %293 = vst.msk [vmem:[#allocation2] sm:$0x3] %vm292, 0.0
          %294 = vst.msk [vmem:[#allocation3] sm:$0x3] %vm292, 0.0
        $region40: #{tpu_custom_call.1} parent=27 // pred_fallthru
          _
        %v295 = vld [vmem:[%s225] sm:$0xff]
        %v296 = vld [vmem:[%s234] sm:$0x3]
        %vm297 = vcmp.ge.s32.totalorder %v296, 0
        %vm298 = vcmp.ne.s32.totalorder %v296, 255
        %vm299 = vmand %vm297, %vm298
        %v300 = vsel %vm299, 1, 0
        %v301 = vcvt.s32.f32 %v300
        %v302 = vlaneseq
        %v303 = vshrl.u32 %v302, 7
        %v304 = vlaneseq
        %v305 = vshrl.u32 %v304, 7
        %v306 = vsub.s32 0, %v305
        %v307 = vrot.slane %v296, %v306
        %v308 = vlaneseq
        %v309 = vshrl.u32 %v308, 7
        %v310 = vsub.s32 1, %v309
        %v311 = vrot.slane %v296, %v310
        %vm312 = vcmp.eq.s32.totalorder %v303, %v307
        %vm313 = vcmp.eq.s32.totalorder %v303, %v311
        %v315 = vcombine.high %v295, %v295
        %v317 = vsel %vm312, %v295, 0.0
        %v318 = vsel %vm313, %v315, 0.0
        %vm319 = vcmask 1043456
        %v320 = vsel %vm319, %v317, 0.0
        %v321 = vrot.slane %v320, 4
        %v322 = vadd.f32 %v320, %v321
        %v323 = vrot.slane %v322, 2
        %v324 = vadd.f32 %v322, %v323
        %v325 = vrot.slane %v324, 1
        %v326 = vadd.f32 %v324, %v325
        %v327 = vsel %vm319, %v318, 0.0
        %v328 = vrot.slane %v327, 4
        %v329 = vadd.f32 %v327, %v328
        %v330 = vrot.slane %v329, 2
        %v331 = vadd.f32 %v329, %v330
        %v332 = vrot.slane %v331, 1
        %v333 = vadd.f32 %v331, %v332
        %v334 = vsel %vm319, %v295, -inf
        %v335 = vrot.slane %v334, 4
        %v336 = vmax.f32 %v334, %v335
        %v337 = vrot.slane %v336, 2
        %v338 = vmax.f32 %v336, %v337
        %v339 = vrot.slane %v338, 1
        %v340 = vmax.f32 %v338, %v339
        %v341 = vsel %vm319, %v315, -inf
        %v342 = vrot.slane %v341, 4
        %v343 = vmax.f32 %v341, %v342
        %v344 = vrot.slane %v343, 2
        %v345 = vmax.f32 %v343, %v344
        %v346 = vrot.slane %v345, 1
        %v347 = vmax.f32 %v345, %v346
        %v350 = vcombine.low %v340, %v347
        %v352 = vsub.f32 %v295, %v350
        %v353 = vmul.f32 %v352, 1.442695
        %v354 = vpow.pop %v353
        %v356 = vcombine.high %v354, %v354
        %v358 = vsel %vm319, %v354, 0.0
        %v359 = vrot.slane %v358, 4
        %v360 = vadd.f32 %v358, %v359
        %v361 = vrot.slane %v360, 2
        %v362 = vadd.f32 %v360, %v361
        %v363 = vrot.slane %v362, 1
        %v364 = vadd.f32 %v362, %v363
        %v365 = vsel %vm319, %v356, 0.0
        %v366 = vrot.slane %v365, 4
        %v367 = vadd.f32 %v365, %v366
        %v368 = vrot.slane %v367, 2
        %v369 = vadd.f32 %v367, %v368
        %v370 = vrot.slane %v369, 1
        %v371 = vadd.f32 %v369, %v370
        %v372 = vlog2.pop %v364
        %v373 = vmul.f32 %v372, 0.6931472
        %v374 = vlog2.pop %v371
        %v375 = vmul.f32 %v374, 0.6931472
        %v376 = vadd.f32 %v340, %v373
        %v377 = vadd.f32 %v347, %v375
        %v378 = vsub.f32 %v376, %v326
        %v379 = vsub.f32 %v377, %v333
        %v380 = vld [vmem:[#allocation2] sm:$0x3]
        %v382 = vlaneseq
        %v383 = vshrl.u32 %v382, 7
        %v384 = vsub.s32 0, %v383
        %v385 = vrot.slane %v301, %v384
        %v386 = vlaneseq
        %v387 = vshrl.u32 %v386, 7
        %v388 = vsub.s32 1, %v387
        %v389 = vrot.slane %v301, %v388
        %v392 = vmul.f32 %v378, %v385
        %v393 = vmul.f32 %v379, %v389
        %v396 = vcombine.low %v392, %v393
        %v398 = vunpack.c.l.s4 1966171168
        %v399 = vunpack.c.0.s8 %v398
        %v400 = vlaneseq
        %v401 = vshrl.u32 %v400, 7
        %v402 = vsub.s32 %v399, %v401
        %v403 = vrot.slane %v396, %v402
        %v405 = vunpack.c.l.s4 1966171168
        %v406 = vunpack.c.0.s8 %v405
        %v407 = vlaneseq
        %v408 = vshrl.u32 %v407, 7
        %v409 = vsub.s32 %v406, %v408
        %v410 = vrot.slane %v403, %v409
        %v412 = vadd.f32 %v380, %v410
        %v413 = vlaneseq
        %vm414 = vcmp.ge.s32.totalorder %v413, 0
        %vm415 = vcmp.lt.s32.totalorder %v413, 256
        %vm416 = vmand %vm414, %vm415
        %417 = vst.msk [vmem:[#allocation2] sm:$0x3] %vm416, %v412
        %v418 = vld [vmem:[#allocation3] sm:$0x3]
        %v419 = vadd.f32 %v418, %v301
        %420 = vst.msk [vmem:[#allocation3] sm:$0x3] %vm416, %v419
        // Predicated region
        $region41: #{tpu_custom_call.1} parent=27 // pred_check
          %p421 = pneg %p285
        $region42: #{tpu_custom_call.1} parent=27 // pred_check_branch
          %423 = sbr.rel (%p421) target = $region44
        $region43: #{tpu_custom_call.1} parent=27 // pred_region
          %v424 = vld [vmem:[#allocation2] sm:$0x3]
          %v426 = vlaneseq
          %v427 = vshrl.u32 %v426, 7
          %v428 = vsub.s32 0, %v427
          %v429 = vrot.slane %v424, %v428
          %v430 = vlaneseq
          %v431 = vshrl.u32 %v430, 7
          %v432 = vsub.s32 1, %v431
          %v433 = vrot.slane %v424, %v432
          %vm436 = vcmask 1040384
          %v437 = vsel %vm436, %v429, 0.0
          %v438 = vsel %vm436, %v433, 0.0
          %v439 = vadd.f32 %v437, %v438
          %440 = vadd.xlane.f32.xlu0 %v439
          %v441 = vpop.xlane.xlu0 %440
          %v442 = vrot.slane %v441, 4
          %v443 = vadd.f32 %v441, %v442
          %v444 = vrot.slane %v443, 2
          %v445 = vadd.f32 %v443, %v444
          %v446 = vrot.slane %v445, 1
          %v447 = vadd.f32 %v445, %v446
          %s448 = vtos %v447
          %v449 = vstv %s448
          %vm450 = vcmask 0
          %451 = vst.msk [vmem:[%s278] sm:$0x1] %vm450, %v449
          %v452 = vld [vmem:[#allocation3] sm:$0x3]
          %v454 = vlaneseq
          %v455 = vshrl.u32 %v454, 7
          %v456 = vsub.s32 0, %v455
          %v457 = vrot.slane %v452, %v456
          %v458 = vlaneseq
          %v459 = vshrl.u32 %v458, 7
          %v460 = vsub.s32 1, %v459
          %v461 = vrot.slane %v452, %v460
          %v464 = vsel %vm436, %v457, 0.0
          %v465 = vsel %vm436, %v461, 0.0
          %v466 = vadd.f32 %v464, %v465
          %467 = vadd.xlane.f32.xlu0 %v466
          %v468 = vpop.xlane.xlu0 %467
          %v469 = vrot.slane %v468, 4
          %v470 = vadd.f32 %v468, %v469
          %v471 = vrot.slane %v470, 2
          %v472 = vadd.f32 %v470, %v471
          %v473 = vrot.slane %v472, 1
          %v474 = vadd.f32 %v472, %v473
          %s475 = vtos %v474
          %v476 = vstv %s475
          %477 = vst.msk [vmem:[%s284] sm:$0x1] %vm450, %v476
        $region44: #{tpu_custom_call.1} parent=27 // pred_fallthru
          _
        %p478 = scmp.lt.s32.totalorder %s26, 1
        %s479 = scalar_select %p478, %s26, 1
        %p480 = scmp.lt.s32.totalorder %s27, 0
        %s481 = scalar_select %p480, %s27, 0
        %s482 = sadd.s32 %s481, %s479
        %s483 = scalar_lea.vmem %s2, %s482
        %p484 = scmp.lt.s32.totalorder %s26, 1
        %s485 = scalar_select %p484, %s26, 1
        %p486 = scmp.lt.s32.totalorder %s27, 0
        %s487 = scalar_select %p486, %s27, 0
        %s488 = sadd.s32 %s487, %s485
        %s489 = scalar_lea.vmem %s3, %s488
        // Predicated region
        $region45: #{tpu_custom_call.1} parent=27 // pred_check
          %p490 = pneg %p120
        $region46: #{tpu_custom_call.1} parent=27 // pred_check_branch
          %492 = sbr.rel (%p490) target = $region48
        $region47: #{tpu_custom_call.1} parent=27 // pred_region
          _
        $region48: #{tpu_custom_call.1} parent=27 // pred_fallthru
          _
        // Predicated region
        $region49: #{tpu_custom_call.1} parent=27 // pred_check
          %p493 = pneg %p148
        $region50: #{tpu_custom_call.1} parent=27 // pred_check_branch
          %495 = sbr.rel (%p493) target = $region52
        $region51: #{tpu_custom_call.1} parent=27 // pred_region
          _
        $region52: #{tpu_custom_call.1} parent=27 // pred_fallthru
          _
      $region28: #{tpu_custom_call.1} parent=5 // pred_fallthru
        _
      %p496 = scmp.le.s32.totalorder 2, %s16
      // Predicated region
      $region53: #{tpu_custom_call.1} parent=5 // pred_check
        %p497 = pneg %p496
      $region54: #{tpu_custom_call.1} parent=5 // pred_check_branch
        %499 = sbr.rel (%p497) target = $region56
      $region55: #{tpu_custom_call.1} parent=5 // pred_region
        %s500 = ssub.s32 %s16, 2
        // Predicated region
        $region57: #{tpu_custom_call.1} parent=55 // pred_check
          %p501 = pneg %p126
        $region58: #{tpu_custom_call.1} parent=55 // pred_check_branch
          %503 = sbr.rel (%p501) target = $region60
        $region59: #{tpu_custom_call.1} parent=55 // pred_region
          %p504 = scmp.lt.s32.totalorder %s29, 1
          %s505 = scalar_select %p504, %s29, 1
          %p506 = scmp.lt.s32.totalorder %s30, 0
          %s507 = scalar_select %p506, %s30, 0
          %s508 = sadd.s32 %s507, %s505
          %s509 = scalar_lea.vmem %s2, %s508
        $region60: #{tpu_custom_call.1} parent=55 // pred_fallthru
          _
        // Predicated region
        $region61: #{tpu_custom_call.1} parent=55 // pred_check
          %p510 = pneg %p154
        $region62: #{tpu_custom_call.1} parent=55 // pred_check_branch
          %512 = sbr.rel (%p510) target = $region64
        $region63: #{tpu_custom_call.1} parent=55 // pred_region
          %p513 = scmp.lt.s32.totalorder %s29, 1
          %s514 = scalar_select %p513, %s29, 1
          %p515 = scmp.lt.s32.totalorder %s30, 0
          %s516 = scalar_select %p515, %s30, 0
          %s517 = sadd.s32 %s516, %s514
          %s518 = scalar_lea.vmem %s3, %s517
        $region64: #{tpu_custom_call.1} parent=55 // pred_fallthru
          _
      $region56: #{tpu_custom_call.1} parent=5 // pred_fallthru
        _
    $region6: #{tpu_custom_call.1} parent=1 // loop_footer
      %s20 = sadd.s32 1, %s16
    $region7: #{tpu_custom_call.1} parent=1 // loop_footer_branch
      %15 = sbr.rel target = $region3
    $region8: #{tpu_custom_call.1} parent=1 // loop_exit
      _
    %519 = vsyncpa [#allocation5], 1
    %s520 = scalar_lea.sflag [#allocation5], 1
    %521 = vsyncpa %s520, 1
    %522 = vsyncpa [#allocation7], 1
    %s523 = scalar_lea.sflag [#allocation7], 1
    %524 = vsyncpa %s523, 1

</llo_original>
